<compile_context>
chip_gen: v5e
topology: v5e:2x2
jax: 0.10.0
libtpu: 0.0.40
codegen_flags: <defaults>
</compile_context>

<pallas_src>
import functools

import jax
import jax.numpy as jnp
from jax.experimental import pallas as pl
from jax.experimental.pallas import tpu as pltpu

BN_EPS = 1e-5
HIDDEN = 128
VMEM_LIMIT_BYTES = 32 * 1024 * 1024  # safe on v5e/v6e (128 MiB) and v7x (64 MiB)


def _round_up(v, m):
    return (v + m - 1) // m * m


def _pick_tile_n(n, f, h, c_pad, budget_bytes=12 * 1024 * 1024):
    """Largest row tile s.t. double-buffered f32 x/h/out tiles fit the VMEM budget."""
    bytes_per_row = 4 * (f + h + c_pad) * 2  # x, h, padded-out tiles, double-buffered
    t = budget_bytes // bytes_per_row
    t = max(8, (min(t, 1024) // 8) * 8)
    if t >= 128:
        t = (t // 128) * 128  # keep the MXU fully fed on v5e's 128x128 tiles
    return int(min(t, _round_up(n, 8)))


# --------------------------------------------------------------------------- kernels
def _lin1_stats_kernel(x_ref, w1_ref, b1_ref, h_ref, hsum_ref, hssq_ref):
    """h_tile = x_tile @ w1_folded + b1_folded; accumulate bn2 sum / sum-of-squares."""
    @pl.when(pl.program_id(0) == 0)
    def _():
        hsum_ref[...] = jnp.zeros_like(hsum_ref)
        hssq_ref[...] = jnp.zeros_like(hssq_ref)

    x = x_ref[...].astype(jnp.bfloat16)                      # [tile_n, F] (bf16 MXU operand)
    h = jnp.dot(x, w1_ref[...],                              # w1_ref already bf16
                preferred_element_type=jnp.float32) + b1_ref[...]  # [tile_n, H] f32
    h_ref[...] = h
    hsum_ref[...] += jnp.sum(h, axis=0, keepdims=True)
    hssq_ref[...] += jnp.sum(h * h, axis=0, keepdims=True)


def _bn2_relu_lin2_kernel(h_ref, s2_ref, t2_ref, w2_ref, b2_ref, out_ref):
    """out_tile = relu(h_tile * s2 + t2) @ w2_padded + b2_padded (lane-dense store)."""
    g = jnp.maximum(h_ref[...] * s2_ref[...] + t2_ref[...], 0.0)   # f32 BN + ReLU
    out_ref[...] = (
        jnp.dot(g.astype(jnp.bfloat16), w2_ref[...],               # w2_ref already bf16
                preferred_element_type=jnp.float32) + b2_ref[...]
    )


# --------------------------------------------------------------------------- wrapper
def agnn_forward(x, params, *, tile_n=None):
    """x: [N, F] float32. params: dict from init_params. Returns [N, C] float32."""
    N, F = x.shape
    H = params["w1"].shape[1]
    C = params["w2"].shape[1]
    C_pad = _round_up(max(C, 1), 128)        # lane-dense output slab, sliced to C below

    if tile_n is None:
        tile_n = _pick_tile_n(N, F, H, C_pad)
    N_pad = _round_up(N, tile_n)
    grid = (N_pad // tile_n,)
    n_extra = N_pad - N

    x32 = x.astype(jnp.float32)

    # ---- bn1 batch statistics (training mode, biased variance) folded into lin1 ----
    m1 = jnp.mean(x32, axis=0, keepdims=True)                       # [1, F]
    v1 = jnp.mean((x32 - m1) ** 2, axis=0, keepdims=True)           # [1, F]
    s1 = params["bn1_w"] * jax.lax.rsqrt(v1 + BN_EPS)               # [1, F]
    t1 = params["bn1_b"] - m1 * s1                                  # [1, F]
    w1f = (params["w1"] * s1.reshape(F, 1)).astype(jnp.bfloat16)    # [F, H]  bf16 MXU operand
    b1f = (params["b1"] + t1 @ params["w1"]).astype(jnp.float32)    # [1, H]  f32

    x_p = x32 if n_extra == 0 else jnp.pad(x32, ((0, n_extra), (0, 0)))

    # ---- kernel 1: lin1 (bn1 folded) + bn2 sum / sum-of-squares accumulation ----
    const_map = lambda i: (0, 0)
    h, h_sum, h_ssq = pl.pallas_call(
        _lin1_stats_kernel,
        grid=grid,
        in_specs=[
            pl.BlockSpec((tile_n, F), lambda i: (i, 0)),
            pl.BlockSpec((F, H), const_map),           # VMEM-resident across tiles
            pl.BlockSpec((1, H), const_map),
        ],
        out_specs=(
            pl.BlockSpec((tile_n, H), lambda i: (i, 0)),
            pl.BlockSpec((1, H), const_map),            # accumulator (constant block)
            pl.BlockSpec((1, H), const_map),            # accumulator (constant block)
        ),
        out_shape=(
            jax.ShapeDtypeStruct((N_pad, H), jnp.float32),
            jax.ShapeDtypeStruct((1, H), jnp.float32),
            jax.ShapeDtypeStruct((1, H), jnp.float32),
        ),
        compiler_params=pltpu.CompilerParams(
            dimension_semantics=("arbitrary",),          # accumulators stay resident
            vmem_limit_bytes=VMEM_LIMIT_BYTES,
        ),
        cost_estimate=pl.CostEstimate(
            flops=2 * N_pad * F * H,
            transcendentals=0,
            bytes_accessed=4 * N_pad * F + 2 * F * H + 4 * N_pad * H + 12 * H,
        ),
    )(x_p, w1f, b1f)

    # ---- bn2 batch statistics from the cross-tile sums (padded rows give exactly b1f) ----
    h_sum = h_sum - n_extra * b1f
    h_ssq = h_ssq - n_extra * (b1f * b1f)
    m2 = h_sum / N
    v2 = jnp.maximum(h_ssq / N - m2 * m2, 0.0)
    s2 = params["bn2_w"] * jax.lax.rsqrt(v2 + BN_EPS)               # [1, H]
    t2 = params["bn2_b"] - m2 * s2                                  # [1, H]

    # lane-dense padded lin2 weights/bias (zero columns sliced off afterwards)
    w2p = jnp.zeros((H, C_pad), jnp.float32).at[:, :C].set(params["w2"]).astype(jnp.bfloat16)
    b2p = jnp.zeros((1, C_pad), jnp.float32).at[:, :C].set(params["b2"])

    # ---- kernel 2: bn2 (folded scale/shift) + ReLU + lin2, sharded across cores ----
    out_p = pl.pallas_call(
        _bn2_relu_lin2_kernel,
        grid=grid,
        in_specs=[
            pl.BlockSpec((tile_n, H), lambda i: (i, 0)),
            pl.BlockSpec((1, H), const_map),
            pl.BlockSpec((1, H), const_map),
            pl.BlockSpec((H, C_pad), const_map),
            pl.BlockSpec((1, C_pad), const_map),
        ],
        out_specs=pl.BlockSpec((tile_n, C_pad), lambda i: (i, 0)),
        out_shape=jax.ShapeDtypeStruct((N_pad, C_pad), jnp.float32),
        compiler_params=pltpu.CompilerParams(
            dimension_semantics=("parallel",),           # megacore-shardable on v7x
            vmem_limit_bytes=VMEM_LIMIT_BYTES,
        ),
        cost_estimate=pl.CostEstimate(
            flops=2 * N_pad * H * C_pad + 3 * N_pad * H,
            transcendentals=0,
            bytes_accessed=4 * N_pad * H + 2 * H * C_pad + 4 * N_pad * C_pad + 12 * H,
        ),
    )(h, s2, t2, w2p, b2p)

    return out_p[:N, :C]


# --------------------------------------------------------------------------- params / refs
def init_params(key, num_features, num_classes, hidden=HIDDEN):
    """Deterministic synthetic parameters matching AGNNNet.__init__ shapes."""
    k1, k2, k3, k4 = jax.random.split(key, 4)
    bn1_w = 1.0 + 0.1 * jax.random.normal(k1, (1, num_features), jnp.float32)
    bn1_b = 0.1 * jax.random.normal(k2, (1, num_features), jnp.float32)
    bn2_w = jnp.ones((1, hidden), jnp.float32)
    bn2_b = jnp.zeros((1, hidden), jnp.float32)
    lim1 = 1.0 / jnp.sqrt(num_features)
    w1 = jax.random.uniform(k3, (num_features, hidden), jnp.float32, -lim1, lim1)
    b1 = jnp.zeros((1, hidden), jnp.float32)
    lim2 = 1.0 / jnp.sqrt(hidden)
    w2 = jax.random.uniform(k4, (hidden, num_classes), jnp.float32, -lim2, lim2)
    b2 = jnp.zeros((1, num_classes), jnp.float32)
    return dict(bn1_w=bn1_w, bn1_b=bn1_b, w1=w1, b1=b1,
                bn2_w=bn2_w, bn2_b=bn2_b, w2=w2, b2=b2)


def agnn_reference(x, params):
    """Pure-JAX f32 reference of the PyTorch forward pass (training-mode BN)."""
    m1 = jnp.mean(x, axis=0, keepdims=True)
    v1 = jnp.mean((x - m1) ** 2, axis=0, keepdims=True)
    x = (x - m1) / jnp.sqrt(v1 + BN_EPS) * params["bn1_w"] + params["bn1_b"]
    h = x @ params["w1"] + params["b1"]
    m2 = jnp.mean(h, axis=0, keepdims=True)
    v2 = jnp.mean((h - m2) ** 2, axis=0, keepdims=True)
    h = (h - m2) / jnp.sqrt(v2 + BN_EPS) * params["bn2_w"] + params["bn2_b"]
    h = jnp.maximum(h, 0.0)
    return h @ params["w2"] + params["b2"]


def agnn_reference_matched(x, params):
    """Reference that mirrors the kernel arithmetic (bn1 fold, bf16 MXU operands)."""
    F = x.shape[1]
    m1 = jnp.mean(x, axis=0, keepdims=True)
    v1 = jnp.mean((x - m1) ** 2, axis=0, keepdims=True)
    s1 = params["bn1_w"] * jax.lax.rsqrt(v1 + BN_EPS)
    t1 = params["bn1_b"] - m1 * s1
    w1f = (params["w1"] * s1.reshape(F, 1)).astype(jnp.bfloat16)
    b1f = params["b1"] + t1 @ params["w1"]
    h = jnp.dot(x.astype(jnp.bfloat16), w1f, preferred_element_type=jnp.float32) + b1f
    m2 = jnp.mean(h, axis=0, keepdims=True)
    v2 = jnp.maximum(jnp.mean(h * h, axis=0, keepdims=True) - m2 * m2, 0.0)
    s2 = params["bn2_w"] * jax.lax.rsqrt(v2 + BN_EPS)
    t2 = params["bn2_b"] - m2 * s2
    g = jnp.maximum(h * s2 + t2, 0.0)
    return jnp.dot(g.astype(jnp.bfloat16), params["w2"].astype(jnp.bfloat16),
                   preferred_element_type=jnp.float32) + params["b2"]


if __name__ == "__main__":
    key = jax.random.PRNGKey(0)
    kx, kp = jax.random.split(key)

    N, num_features, num_classes = 8, 16, 4
    x = jax.random.normal(kx, (N, num_features), jnp.float32)
    params = init_params(kp, num_features, num_classes)

    fwd = jax.jit(functools.partial(agnn_forward))
    out = jax.block_until_ready(fwd(x, params))
    assert out.shape == (N, num_classes)

    # Structural check against a reference with identical (bf16-MXU) arithmetic.
    ref_matched = agnn_reference_matched(x, params)
    assert jnp.allclose(out, ref_matched, atol=1e-3, rtol=1e-3), \
        f"matched-ref max err {jnp.max(jnp.abs(out - ref_matched))}"

    # Fidelity check against the full-f32 PyTorch-equivalent math (bf16 MXU operands
    # with f32 accumulation introduce ~1e-3 level differences at these shapes).
    ref_f32 = agnn_reference(x, params)
    assert jnp.allclose(out, ref_f32, atol=2e-2, rtol=2e-2), \
        f"f32-ref max err {jnp.max(jnp.abs(out - ref_f32))}"

    print("KERNEL_OK")
</pallas_src>

<mosaic_0001>
module attributes {stable_mosaic.version = 11 : i64} {
  func.func @_bn2_relu_lin2_kernel(%arg0: i32, %arg1: memref<8x128xf32, #tpu.memory_space<vmem>>, %arg2: memref<1x128xf32, #tpu.memory_space<vmem>>, %arg3: memref<1x128xf32, #tpu.memory_space<vmem>>, %arg4: memref<128x128xbf16, #tpu.memory_space<vmem>>, %arg5: memref<1x128xf32, #tpu.memory_space<vmem>>, %arg6: memref<8x128xf32, #tpu.memory_space<vmem>>) attributes {dimension_semantics = [#tpu.dimension_semantics<parallel>], iteration_bounds = array<i64: 1>, scalar_prefetch = 0 : i64, scratch_operands = 0 : i64, tpu.core_type = #tpu.core_type<tc>, window_params = [{transform_indices = @transform_0, window_bounds = array<i64: 8, 128>}, {pipeline_mode = #tpu.pipeline_mode<synchronous>, transform_indices = @transform_1, window_bounds = array<i64: 1, 128>}, {pipeline_mode = #tpu.pipeline_mode<synchronous>, transform_indices = @transform_2, window_bounds = array<i64: 1, 128>}, {pipeline_mode = #tpu.pipeline_mode<synchronous>, transform_indices = @transform_3, window_bounds = array<i64: 128, 128>}, {pipeline_mode = #tpu.pipeline_mode<synchronous>, transform_indices = @transform_4, window_bounds = array<i64: 1, 128>}, {transform_indices = @transform_5, window_bounds = array<i64: 8, 128>}]} {
    %c0 = arith.constant 0 : index
    %c0_0 = arith.constant 0 : index
    %0 = vector.load %arg1[%c0, %c0_0] : memref<8x128xf32, #tpu.memory_space<vmem>>, vector<8x128xf32>
    %c0_1 = arith.constant 0 : index
    %c0_2 = arith.constant 0 : index
    %1 = vector.load %arg2[%c0_1, %c0_2] : memref<1x128xf32, #tpu.memory_space<vmem>>, vector<1x128xf32>
    %2 = vector.broadcast %1 : vector<1x128xf32> to vector<8x128xf32>
    %3 = arith.mulf %0, %2 : vector<8x128xf32>
    %c0_3 = arith.constant 0 : index
    %c0_4 = arith.constant 0 : index
    %4 = vector.load %arg3[%c0_3, %c0_4] : memref<1x128xf32, #tpu.memory_space<vmem>>, vector<1x128xf32>
    %5 = vector.broadcast %4 : vector<1x128xf32> to vector<8x128xf32>
    %6 = arith.addf %3, %5 : vector<8x128xf32>
    %cst = arith.constant 0.000000e+00 : f32
    %7 = vector.broadcast %cst : f32 to vector<8x128xf32>
    %8 = arith.maximumf %6, %7 : vector<8x128xf32>
    %9 = arith.truncf %8 : vector<8x128xf32> to vector<8x128xbf16>
    %c0_5 = arith.constant 0 : index
    %c0_6 = arith.constant 0 : index
    %10 = vector.load %arg4[%c0_5, %c0_6] : memref<128x128xbf16, #tpu.memory_space<vmem>>, vector<128x128xbf16>
    %cst_7 = arith.constant dense<0.000000e+00> : vector<8x128xf32>
    %11 = tpu.matmul %9, %10, %cst_7 {dimension_numbers = #tpu.dot_dimension_numbers<[1], [0], [0], [1], [0, 0, 1, 1], [], []>} : vector<8x128xbf16>, vector<128x128xbf16>, vector<8x128xf32> -> vector<8x128xf32>
    %c0_8 = arith.constant 0 : index
    %c0_9 = arith.constant 0 : index
    %12 = vector.load %arg5[%c0_8, %c0_9] : memref<1x128xf32, #tpu.memory_space<vmem>>, vector<1x128xf32>
    %13 = vector.broadcast %12 : vector<1x128xf32> to vector<8x128xf32>
    %14 = arith.addf %11, %13 : vector<8x128xf32>
    %c0_10 = arith.constant 0 : index
    %c0_11 = arith.constant 0 : index
    %15 = vector.load %arg6[%c0_10, %c0_11] : memref<8x128xf32, #tpu.memory_space<vmem>>, vector<8x128xf32>
    tpu.vector_store %arg6[%c0_10, %c0_11], %14 {strides = array<i32>} : memref<8x128xf32, #tpu.memory_space<vmem>>, vector<8x128xf32>,
    return
  }
  func.func @transform_0(%arg0: i32) -> (i32, i32) {
    %c0_i32 = arith.constant 0 : i32
    %c0_i32_0 = arith.constant 0 : i32
    return %arg0, %c0_i32 : i32, i32
  }
  func.func @transform_1(%arg0: i32) -> (i32, i32) {
    %c0_i32 = arith.constant 0 : i32
    %c0_i32_0 = arith.constant 0 : i32
    %c0_i32_1 = arith.constant 0 : i32
    return %c0_i32, %c0_i32_0 : i32, i32
  }
  func.func @transform_2(%arg0: i32) -> (i32, i32) {
    %c0_i32 = arith.constant 0 : i32
    %c0_i32_0 = arith.constant 0 : i32
    %c0_i32_1 = arith.constant 0 : i32
    return %c0_i32, %c0_i32_0 : i32, i32
  }
  func.func @transform_3(%arg0: i32) -> (i32, i32) {
    %c0_i32 = arith.constant 0 : i32
    %c0_i32_0 = arith.constant 0 : i32
    %c0_i32_1 = arith.constant 0 : i32
    return %c0_i32, %c0_i32_0 : i32, i32
  }
  func.func @transform_4(%arg0: i32) -> (i32, i32) {
    %c0_i32 = arith.constant 0 : i32
    %c0_i32_0 = arith.constant 0 : i32
    %c0_i32_1 = arith.constant 0 : i32
    return %c0_i32, %c0_i32_0 : i32, i32
  }
  func.func @transform_5(%arg0: i32) -> (i32, i32) {
    %c0_i32 = arith.constant 0 : i32
    %c0_i32_0 = arith.constant 0 : i32
    return %arg0, %c0_i32 : i32, i32
  }
}

module attributes {stable_mosaic.version = 11 : i64} {
  func.func @_lin1_stats_kernel(%arg0: i32, %arg1: memref<8x16xf32, #tpu.memory_space<vmem>>, %arg2: memref<16x128xbf16, #tpu.memory_space<vmem>>, %arg3: memref<1x128xf32, #tpu.memory_space<vmem>>, %arg4: memref<8x128xf32, #tpu.memory_space<vmem>>, %arg5: memref<1x128xf32, #tpu.memory_space<vmem>>, %arg6: memref<1x128xf32, #tpu.memory_space<vmem>>) attributes {dimension_semantics = [#tpu.dimension_semantics<arbitrary>], iteration_bounds = array<i64: 1>, scalar_prefetch = 0 : i64, scratch_operands = 0 : i64, tpu.core_type = #tpu.core_type<tc>, window_params = [{transform_indices = @transform_0, window_bounds = array<i64: 8, 16>}, {pipeline_mode = #tpu.pipeline_mode<synchronous>, transform_indices = @transform_1, window_bounds = array<i64: 16, 128>}, {pipeline_mode = #tpu.pipeline_mode<synchronous>, transform_indices = @transform_2, window_bounds = array<i64: 1, 128>}, {transform_indices = @transform_3, window_bounds = array<i64: 8, 128>}, {pipeline_mode = #tpu.pipeline_mode<synchronous>, transform_indices = @transform_4, window_bounds = array<i64: 1, 128>}, {pipeline_mode = #tpu.pipeline_mode<synchronous>, transform_indices = @transform_5, window_bounds = array<i64: 1, 128>}]} {
    %c0_i32 = arith.constant 0 : i32
    %0 = arith.cmpi eq, %arg0, %c0_i32 : i32
    %1 = arith.extui %0 : i1 to i32
    %c0_i32_0 = arith.constant 0 : i32
    %2 = arith.cmpi ne, %1, %c0_i32_0 : i32
    scf.if %2 {
      %cst_18 = arith.constant 0.000000e+00 : f32
      %22 = vector.broadcast %cst_18 : f32 to vector<1x128xf32>
      %c0_19 = arith.constant 0 : index
      %c0_20 = arith.constant 0 : index
      %23 = vector.load %arg5[%c0_19, %c0_20] : memref<1x128xf32, #tpu.memory_space<vmem>>, vector<1x128xf32>
      tpu.vector_store %arg5[%c0_19, %c0_20], %22 {strides = array<i32>} : memref<1x128xf32, #tpu.memory_space<vmem>>, vector<1x128xf32>,
      %cst_21 = arith.constant 0.000000e+00 : f32
      %24 = vector.broadcast %cst_21 : f32 to vector<1x128xf32>
      %c0_22 = arith.constant 0 : index
      %c0_23 = arith.constant 0 : index
      %25 = vector.load %arg6[%c0_22, %c0_23] : memref<1x128xf32, #tpu.memory_space<vmem>>, vector<1x128xf32>
      tpu.vector_store %arg6[%c0_22, %c0_23], %24 {strides = array<i32>} : memref<1x128xf32, #tpu.memory_space<vmem>>, vector<1x128xf32>,
    } else {
    }
    %c0 = arith.constant 0 : index
    %c0_1 = arith.constant 0 : index
    %3 = vector.load %arg1[%c0, %c0_1] : memref<8x16xf32, #tpu.memory_space<vmem>>, vector<8x16xf32>
    %4 = arith.truncf %3 : vector<8x16xf32> to vector<8x16xbf16>
    %c0_2 = arith.constant 0 : index
    %c0_3 = arith.constant 0 : index
    %5 = vector.load %arg2[%c0_2, %c0_3] : memref<16x128xbf16, #tpu.memory_space<vmem>>, vector<16x128xbf16>
    %cst = arith.constant dense<0.000000e+00> : vector<8x128xf32>
    %6 = tpu.matmul %4, %5, %cst {dimension_numbers = #tpu.dot_dimension_numbers<[1], [0], [0], [1], [0, 0, 1, 1], [], []>} : vector<8x16xbf16>, vector<16x128xbf16>, vector<8x128xf32> -> vector<8x128xf32>
    %c0_4 = arith.constant 0 : index
    %c0_5 = arith.constant 0 : index
    %7 = vector.load %arg3[%c0_4, %c0_5] : memref<1x128xf32, #tpu.memory_space<vmem>>, vector<1x128xf32>
    %8 = vector.broadcast %7 : vector<1x128xf32> to vector<8x128xf32>
    %9 = arith.addf %6, %8 : vector<8x128xf32>
    %c0_6 = arith.constant 0 : index
    %c0_7 = arith.constant 0 : index
    %10 = vector.load %arg4[%c0_6, %c0_7] : memref<8x128xf32, #tpu.memory_space<vmem>>, vector<8x128xf32>
    tpu.vector_store %arg4[%c0_6, %c0_7], %9 {strides = array<i32>} : memref<8x128xf32, #tpu.memory_space<vmem>>, vector<8x128xf32>,
    %c0_8 = arith.constant 0 : index
    %c0_9 = arith.constant 0 : index
    %11 = vector.load %arg5[%c0_8, %c0_9] : memref<1x128xf32, #tpu.memory_space<vmem>>, vector<1x128xf32>
    %cst_10 = arith.constant dense<0.000000e+00> : vector<128xf32>
    %12 = vector.multi_reduction <add>, %9, %cst_10 [0] : vector<8x128xf32> to vector<128xf32>
    %13 = vector.shape_cast %12 : vector<128xf32> to vector<1x128xf32>
    %14 = arith.addf %11, %13 : vector<1x128xf32>
    %c0_11 = arith.constant 0 : index
    %c0_12 = arith.constant 0 : index
    %15 = vector.load %arg5[%c0_11, %c0_12] : memref<1x128xf32, #tpu.memory_space<vmem>>, vector<1x128xf32>
    tpu.vector_store %arg5[%c0_11, %c0_12], %14 {strides = array<i32>} : memref<1x128xf32, #tpu.memory_space<vmem>>, vector<1x128xf32>,
    %c0_13 = arith.constant 0 : index
    %c0_14 = arith.constant 0 : index
    %16 = vector.load %arg6[%c0_13, %c0_14] : memref<1x128xf32, #tpu.memory_space<vmem>>, vector<1x128xf32>
    %17 = arith.mulf %9, %9 : vector<8x128xf32>
    %cst_15 = arith.constant dense<0.000000e+00> : vector<128xf32>
    %18 = vector.multi_reduction <add>, %17, %cst_15 [0] : vector<8x128xf32> to vector<128xf32>
    %19 = vector.shape_cast %18 : vector<128xf32> to vector<1x128xf32>
    %20 = arith.addf %16, %19 : vector<1x128xf32>
    %c0_16 = arith.constant 0 : index
    %c0_17 = arith.constant 0 : index
    %21 = vector.load %arg6[%c0_16, %c0_17] : memref<1x128xf32, #tpu.memory_space<vmem>>, vector<1x128xf32>
    tpu.vector_store %arg6[%c0_16, %c0_17], %20 {strides = array<i32>} : memref<1x128xf32, #tpu.memory_space<vmem>>, vector<1x128xf32>,
    return
  }
  func.func @transform_0(%arg0: i32) -> (i32, i32) {
    %c0_i32 = arith.constant 0 : i32
    %c0_i32_0 = arith.constant 0 : i32
    return %arg0, %c0_i32 : i32, i32
  }
  func.func @transform_1(%arg0: i32) -> (i32, i32) {
    %c0_i32 = arith.constant 0 : i32
    %c0_i32_0 = arith.constant 0 : i32
    %c0_i32_1 = arith.constant 0 : i32
    return %c0_i32, %c0_i32_0 : i32, i32
  }
  func.func @transform_2(%arg0: i32) -> (i32, i32) {
    %c0_i32 = arith.constant 0 : i32
    %c0_i32_0 = arith.constant 0 : i32
    %c0_i32_1 = arith.constant 0 : i32
    return %c0_i32, %c0_i32_0 : i32, i32
  }
  func.func @transform_3(%arg0: i32) -> (i32, i32) {
    %c0_i32 = arith.constant 0 : i32
    %c0_i32_0 = arith.constant 0 : i32
    return %arg0, %c0_i32 : i32, i32
  }
  func.func @transform_4(%arg0: i32) -> (i32, i32) {
    %c0_i32 = arith.constant 0 : i32
    %c0_i32_0 = arith.constant 0 : i32
    %c0_i32_1 = arith.constant 0 : i32
    return %c0_i32, %c0_i32_0 : i32, i32
  }
  func.func @transform_5(%arg0: i32) -> (i32, i32) {
    %c0_i32 = arith.constant 0 : i32
    %c0_i32_0 = arith.constant 0 : i32
    %c0_i32_1 = arith.constant 0 : i32
    return %c0_i32, %c0_i32_0 : i32, i32
  }
}

</mosaic_0001>

<llo_original>
// kernel: agnn_forward.3
$region0: #{agnn_forward.3}
  #allocation0 [shape = 'u32[]', space=smem, size = 0x4, offset = 0x4, fixed_abs, tag = 'smem constant byte address 0x4 - core index']
  #allocation1 [shape = 'u32[72,128]{1,0:T(1,128)}', space=vmem, size = 0x9000, scoped, tag = 'internal scratch']
  %s0 = inlined_call_operand.vmem [shape: f32[8,128], index: 0, kind: input, shape index: {}]
  %s1 = inlined_call_operand.vmem [shape: f32[1,128], index: 1, kind: input, shape index: {}]
  %s2 = inlined_call_operand.vmem [shape: f32[1,128], index: 2, kind: input, shape index: {}]
  %s3 = inlined_call_operand.vmem [shape: bf16[128,128], index: 3, kind: input, shape index: {}]
  %s4 = inlined_call_operand.vmem [shape: f32[1,128], index: 4, kind: input, shape index: {}]
  %s5 = inlined_call_operand.vmem [shape: f32[8,128], index: 5, kind: output, shape index: {}]
  %s6 = sld [smem:[#allocation0]]
  $region30: #{agnn_forward.3} parent=0
    _
  %s8 = ssub.s32 1, %s6
  %s9 = scalar_select 0, %s8, %s6
  // Predicated region
  $region2: #{agnn_forward.3} parent=0 // pred_check
    _
  $region3: #{agnn_forward.3} parent=0 // pred_check_branch
    %11 = sbr.rel (0) target = $region5
  $region4: #{agnn_forward.3} parent=0 // pred_region
    _
  $region5: #{agnn_forward.3} parent=0 // pred_fallthru
    _
  // Predicated region
  $region6: #{agnn_forward.3} parent=0 // pred_check
    _
  $region7: #{agnn_forward.3} parent=0 // pred_check_branch
    %13 = sbr.rel (0) target = $region9
  $region8: #{agnn_forward.3} parent=0 // pred_region
    _
  $region9: #{agnn_forward.3} parent=0 // pred_fallthru
    _
  // Predicated region
  $region10: #{agnn_forward.3} parent=0 // pred_check
    _
  $region11: #{agnn_forward.3} parent=0 // pred_check_branch
    %15 = sbr.rel (0) target = $region13
  $region12: #{agnn_forward.3} parent=0 // pred_region
    _
  $region13: #{agnn_forward.3} parent=0 // pred_fallthru
    _
  // Predicated region
  $region14: #{agnn_forward.3} parent=0 // pred_check
    _
  $region15: #{agnn_forward.3} parent=0 // pred_check_branch
    %17 = sbr.rel (0) target = $region17
  $region16: #{agnn_forward.3} parent=0 // pred_region
    _
  $region17: #{agnn_forward.3} parent=0 // pred_fallthru
    _
  // Predicated region
  $region18: #{agnn_forward.3} parent=0 // pred_check
    _
  $region19: #{agnn_forward.3} parent=0 // pred_check_branch
    %19 = sbr.rel (0) target = $region21
  $region20: #{agnn_forward.3} parent=0 // pred_region
    _
  $region21: #{agnn_forward.3} parent=0 // pred_fallthru
    _
  %v20 = vld [vmem:[%s0] sm:$0xff]
  %v21 = vld [vmem:[%s1] sm:$0x1]
  %v23 = vperm.slane %v21, 0
  %v25 = vmul.f32 %v20, %v23
  %v26 = vld [vmem:[%s2] sm:$0x1]
  %v28 = vperm.slane %v26, 0
  %v30 = vadd.f32 %v25, %v28
  %v31 = vmax.f32 %v30, 0.0
  %v32 = vpack.c.bf16 %v31, %v31
  %v33 = vld [vmem:[%s3] sm:$0xf]
  %v34 = vld [vmem:[%s3 + $0x4] sm:$0xf]
  %v35 = vld [vmem:[%s3 + $0x8] sm:$0xf]
  %v36 = vld [vmem:[%s3 + $0xc] sm:$0xf]
  %v37 = vld [vmem:[%s3 + $0x10] sm:$0xf]
  %v38 = vld [vmem:[%s3 + $0x14] sm:$0xf]
  %v39 = vld [vmem:[%s3 + $0x18] sm:$0xf]
  %v40 = vld [vmem:[%s3 + $0x1c] sm:$0xf]
  %v41 = vld [vmem:[%s3 + $0x20] sm:$0xf]
  %v42 = vld [vmem:[%s3 + $0x24] sm:$0xf]
  %v43 = vld [vmem:[%s3 + $0x28] sm:$0xf]
  %v44 = vld [vmem:[%s3 + $0x2c] sm:$0xf]
  %v45 = vld [vmem:[%s3 + $0x30] sm:$0xf]
  %v46 = vld [vmem:[%s3 + $0x34] sm:$0xf]
  %v47 = vld [vmem:[%s3 + $0x38] sm:$0xf]
  %v48 = vld [vmem:[%s3 + $0x3c] sm:$0xf]
  %v49 = vld [vmem:[%s4] sm:$0x1]
  %v51 = vperm.slane %v49, 0
  %v69 = vunpack.c.l.b16 %v33
  %v70 = vunpack.c.l.b16 %v34
  %v71 = vunpack.c.l.b16 %v35
  %v72 = vunpack.c.l.b16 %v36
  %v73 = vunpack.c.l.b16 %v37
  %v74 = vunpack.c.l.b16 %v38
  %v75 = vunpack.c.l.b16 %v39
  %v76 = vunpack.c.l.b16 %v40
  %v77 = vunpack.c.l.b16 %v41
  %v78 = vunpack.c.l.b16 %v42
  %v79 = vunpack.c.l.b16 %v43
  %v80 = vunpack.c.l.b16 %v44
  %v81 = vunpack.c.l.b16 %v45
  %v82 = vunpack.c.l.b16 %v46
  %v83 = vunpack.c.l.b16 %v47
  %v84 = vunpack.c.l.b16 %v48
  %v85 = vpack.c.b16 %v70, %v69
  %v86 = vpack.c.b16 %v72, %v71
  %v87 = vpack.c.b16 %v74, %v73
  %v88 = vpack.c.b16 %v76, %v75
  %v89 = vpack.c.b16 %v78, %v77
  %v90 = vpack.c.b16 %v80, %v79
  %v91 = vpack.c.b16 %v82, %v81
  %v92 = vpack.c.b16 %v84, %v83
  %101 = vmatpush.bf16.msra.mxu0 %v92
  %102 = vmatpush.bf16.msra.mxu0 %v91
  %103 = vmatpush.bf16.msra.mxu0 %v90
  %104 = vmatpush.bf16.msra.mxu0 %v89
  %105 = vmatpush.bf16.msra.mxu0 %v88
  %106 = vmatpush.bf16.msra.mxu0 %v87
  %107 = vmatpush.bf16.msra.mxu0 %v86
  %108 = vmatpush.bf16.msra.mxu0 %v85
  %109 = vmatmul.bf16.gmra.mxu0 %v32
  %v110 = vpop.f32.mrf.mxu0
  %v111 = vadd.f32 %v51, %v110
  %v112 = vpop.f32.mrf.mxu0
  %113 = vdwg.mxu0
  %114 = vst [vmem:[%s5] sm:$0xff] %v111
  // Predicated region
  $region22: #{agnn_forward.3} parent=0 // pred_check
    _
  $region23: #{agnn_forward.3} parent=0 // pred_check_branch
    %116 = sbr.rel (0) target = $region25
  $region24: #{agnn_forward.3} parent=0 // pred_region
    _
  $region25: #{agnn_forward.3} parent=0 // pred_fallthru
    _
  // Predicated region
  $region26: #{agnn_forward.3} parent=0 // pred_check
    _
  $region27: #{agnn_forward.3} parent=0 // pred_check_branch
    %118 = sbr.rel (0) target = $region29
  $region28: #{agnn_forward.3} parent=0 // pred_region
    _
  $region29: #{agnn_forward.3} parent=0 // pred_fallthru
    _

// kernel: agnn_forward.2
$region0: #{agnn_forward.2}
  #allocation0 [shape = 'u32[]', space=smem, size = 0x4, offset = 0x4, fixed_abs, tag = 'smem constant byte address 0x4 - core index']
  #allocation1 [shape = 'u32[72,128]{1,0:T(1,128)}', space=vmem, size = 0x9000, scoped, tag = 'internal scratch']
  %s0 = inlined_call_operand.vmem [shape: f32[8,16], index: 0, kind: input, shape index: {}]
  %s1 = inlined_call_operand.vmem [shape: bf16[16,128], index: 1, kind: input, shape index: {}]
  %s2 = inlined_call_operand.vmem [shape: f32[1,128], index: 2, kind: input, shape index: {}]
  %s3 = inlined_call_operand.vmem [shape: f32[8,128], index: 3, kind: output, shape index: {0}]
  %s4 = inlined_call_operand.vmem [shape: f32[1,128], index: 4, kind: output, shape index: {1}]
  %s5 = inlined_call_operand.vmem [shape: f32[1,128], index: 5, kind: output, shape index: {2}]
  %6 = xla_tuple %s3, %s4, %s5
  %s7 = sld [smem:[#allocation0]]
  $region42: #{agnn_forward.2} parent=0
    _
  %s9 = ssub.s32 1, %s7
  %s10 = scalar_select 0, %s9, %s7
  // Predicated region
  $region2: #{agnn_forward.2} parent=0 // pred_check
    _
  $region3: #{agnn_forward.2} parent=0 // pred_check_branch
    %12 = sbr.rel (0) target = $region5
  $region4: #{agnn_forward.2} parent=0 // pred_region
    _
  $region5: #{agnn_forward.2} parent=0 // pred_fallthru
    _
  // Predicated region
  $region6: #{agnn_forward.2} parent=0 // pred_check
    _
  $region7: #{agnn_forward.2} parent=0 // pred_check_branch
    %14 = sbr.rel (0) target = $region9
  $region8: #{agnn_forward.2} parent=0 // pred_region
    _
  $region9: #{agnn_forward.2} parent=0 // pred_fallthru
    _
  // Predicated region
  $region10: #{agnn_forward.2} parent=0 // pred_check
    _
  $region11: #{agnn_forward.2} parent=0 // pred_check_branch
    %16 = sbr.rel (0) target = $region13
  $region12: #{agnn_forward.2} parent=0 // pred_region
    _
  $region13: #{agnn_forward.2} parent=0 // pred_fallthru
    _
  %p18 = scmp.eq.s32.totalorder 0, 0
  // Predicated region
  $region14: #{agnn_forward.2} parent=0 // pred_check
    %p19 = pneg %p18
  $region15: #{agnn_forward.2} parent=0 // pred_check_branch
    %21 = sbr.rel (%p19) target = $region17
  $region16: #{agnn_forward.2} parent=0 // pred_region
    %22 = vst [vmem:[%s4] sm:$0x1] 0.0
    %23 = vst [vmem:[%s5] sm:$0x1] 0.0
  $region17: #{agnn_forward.2} parent=0 // pred_fallthru
    _
  %v24 = vld [vmem:[%s0] sm:$0xff]
  %v25 = vpack.c.bf16 %v24, %v24
  %v26 = vld [vmem:[%s1] sm:$0xf]
  %v27 = vld [vmem:[%s1 + $0x4] sm:$0xf]
  %v28 = vld [vmem:[%s2] sm:$0x1]
  %v30 = vperm.slane %v28, 0
  %v34 = vunpack.c.l.b16 %v26
  %v35 = vunpack.c.l.b16 %v27
  %v36 = vpack.c.b16 %v35, %v34
  %vm38 = vcmask 130048
  %v40 = vsel %vm38, %v25, 0
  %42 = vmatpush.bf16.msra.mxu0 0
  %43 = vmatpush.bf16.msra.mxu0 0
  %44 = vmatpush.bf16.msra.mxu0 0
  %45 = vmatpush.bf16.msra.mxu0 0
  %46 = vmatpush.bf16.msra.mxu0 0
  %47 = vmatpush.bf16.msra.mxu0 0
  %48 = vmatpush.bf16.msra.mxu0 0
  %49 = vmatpush.bf16.msra.mxu0 %v36
  %50 = vmatmul.bf16.gmra.mxu0 %v40
  %v51 = vpop.f32.mrf.mxu0
  %v52 = vadd.f32 %v30, %v51
  %v53 = vpop.f32.mrf.mxu0
  %54 = vdwg.mxu0
  %55 = vst [vmem:[%s3] sm:$0xff] %v52
  %v56 = vld [vmem:[%s4] sm:$0x1]
  %v57 = vrot.slane %v52, 4
  %v58 = vadd.f32 %v52, %v57
  %v59 = vrot.slane %v58, 2
  %v60 = vadd.f32 %v58, %v59
  %v61 = vrot.slane %v60, 1
  %v62 = vadd.f32 %v60, %v61
  %v63 = vadd.f32 %v56, %v62
  %64 = vst [vmem:[%s4] sm:$0x1] %v63
  %v65 = vld [vmem:[%s5] sm:$0x1]
  %v66 = vmul.f32 %v52, %v52
  %v67 = vrot.slane %v66, 4
  %v68 = vadd.f32 %v66, %v67
  %v69 = vrot.slane %v68, 2
  %v70 = vadd.f32 %v68, %v69
  %v71 = vrot.slane %v70, 1
  %v72 = vadd.f32 %v70, %v71
  %v73 = vadd.f32 %v65, %v72
  %74 = vst [vmem:[%s5] sm:$0x1] %v73
  // Predicated region
  $region18: #{agnn_forward.2} parent=0 // pred_check
    _
  $region19: #{agnn_forward.2} parent=0 // pred_check_branch
    %76 = sbr.rel (0) target = $region21
  $region20: #{agnn_forward.2} parent=0 // pred_region
    _
  $region21: #{agnn_forward.2} parent=0 // pred_fallthru
    _
  // Predicated region
  $region22: #{agnn_forward.2} parent=0 // pred_check
    _
  $region23: #{agnn_forward.2} parent=0 // pred_check_branch
    %78 = sbr.rel (0) target = $region25
  $region24: #{agnn_forward.2} parent=0 // pred_region
    _
  $region25: #{agnn_forward.2} parent=0 // pred_fallthru
    _
  // Predicated region
  $region26: #{agnn_forward.2} parent=0 // pred_check
    _
  $region27: #{agnn_forward.2} parent=0 // pred_check_branch
    %80 = sbr.rel (0) target = $region29
  $region28: #{agnn_forward.2} parent=0 // pred_region
    _
  $region29: #{agnn_forward.2} parent=0 // pred_fallthru
    _
  // Predicated region
  $region30: #{agnn_forward.2} parent=0 // pred_check
    _
  $region31: #{agnn_forward.2} parent=0 // pred_check_branch
    %82 = sbr.rel (0) target = $region33
  $region32: #{agnn_forward.2} parent=0 // pred_region
    _
  $region33: #{agnn_forward.2} parent=0 // pred_fallthru
    _
  // Predicated region
  $region34: #{agnn_forward.2} parent=0 // pred_check
    _
  $region35: #{agnn_forward.2} parent=0 // pred_check_branch
    %84 = sbr.rel (0) target = $region37
  $region36: #{agnn_forward.2} parent=0 // pred_region
    _
  $region37: #{agnn_forward.2} parent=0 // pred_fallthru
    _
  // Predicated region
  $region38: #{agnn_forward.2} parent=0 // pred_check
    _
  $region39: #{agnn_forward.2} parent=0 // pred_check_branch
    %86 = sbr.rel (0) target = $region41
  $region40: #{agnn_forward.2} parent=0 // pred_region
    _
  $region41: #{agnn_forward.2} parent=0 // pred_fallthru
    _

</llo_original>
